<compile_context>
chip_gen: v6e
topology: v6e:2x2x1
jax: 0.10.0
libtpu: 0.0.40
codegen_flags: <defaults>
</compile_context>

<pallas_src>
import functools

import jax
import jax.numpy as jnp
from jax.experimental import pallas as pl
from jax.experimental.pallas import tpu as pltpu


# ---------------------------------------------------------------------------
# Kernel
# ---------------------------------------------------------------------------
def _smooth_kernel(x_ref, o_ref, *, h, w):
    """Separable [1,2,1] x [1,2,1] / 16 blur with replication-pad edges.

    Block layout: (bc_tile, h*w) -- each sublane row is one full image
    flattened along the (dense) lane axis; +-1 / +-w shifts are lane rolls
    (XLU).  Edge replication + wraparound cleanup is folded into per-lane
    weight vectors built once on a (1, h*w) row and broadcast into the muls.
    """
    hw = h * w
    x = x_ref[...].astype(jnp.float32)                      # (bc_tile, hw)

    # ---- per-lane weights, built on a (1, hw) row: negligible VPU work. ----
    pos = jax.lax.broadcasted_iota(jnp.int32, (1, hw), 1)
    if w & (w - 1) == 0:
        col = jnp.bitwise_and(pos, w - 1)                   # w is a power of 2
    else:
        col = jax.lax.rem(pos, w)
    zero = jnp.float32(0.0)
    one = jnp.float32(1.0)
    sixteenth = jnp.float32(1.0 / 16.0)

    w_l = jnp.where(col == 0, zero, one)        # weight of the col-1 sample
    w_r = jnp.where(col == w - 1, zero, one)    # weight of the col+1 sample
    w_c = 4.0 - w_l - w_r                       # 2 + replication corrections

    w_u = jnp.where(pos < w, zero, sixteenth)              # row-1 sample / 16
    w_d = jnp.where(pos >= (h - 1) * w, zero, sixteenth)   # row+1 sample / 16
    w_m = 4.0 * sixteenth - w_u - w_d           # (2 + corrections) / 16

    def lane_roll(v, shift):
        shift = shift % hw
        return v if shift == 0 else pltpu.roll(v, shift, 1)

    # pltpu.roll follows the numpy convention: roll(v, s)[i] == v[(i - s) % n]
    # (statically assumed; verified by the unit test in __main__).  Any value
    # that wrapped across a row / image boundary is multiplied by a 0 weight,
    # and the replicated-edge contribution is absorbed into the center weight.
    left = lane_roll(x, 1)                      # x[i-1]
    right = lane_roll(x, hw - 1)                # x[i+1]
    row_blur = w_l * left + w_c * x + w_r * right

    up = lane_roll(row_blur, w)                 # row_blur[i-w]
    down = lane_roll(row_blur, hw - w)          # row_blur[i+w]
    out = w_u * up + w_m * row_blur + w_d * down

    o_ref[...] = out.astype(o_ref.dtype)


# ---------------------------------------------------------------------------
# Tiling
# ---------------------------------------------------------------------------
def _pick_bc_tile(bc, hw, itemsize):
    """Rows (b*c slabs) per block.

    Targets ~2 MiB raw input tiles (amortizes the ~0.35 us per-step overhead,
    comfortably on the measured HBM-roofline knee), keeps >= 8 grid steps when
    the data is big enough (pipelining + v7x dual-TensorCore sharding of the
    "parallel" axis), and aligns the sublane count to the dtype's native
    packing (8 for 32-bit, 16 for 16-bit, 32 for 8-bit).
    """
    sub = {4: 8, 2: 16, 1: 32}.get(itemsize, 8)
    row_bytes = max(1, hw * itemsize)

    max_rows = max(1, (2 * 1024 * 1024) // row_bytes)       # <= ~2 MiB block
    min_rows = max(1, (256 * 1024) // row_bytes)             # >= ~256 KiB block
    rows_for_8_steps = -(-bc // 8)                            # cdiv(bc, 8)

    t = min(max_rows, max(min_rows, rows_for_8_steps))
    if t >= bc:
        return bc                                  # full dim -> always legal
    # TODO(synk): add hw-axis blocking (with a +-w halo for the vertical roll)
    # for very large images where even a few flattened rows exceed VMEM.
    return min(bc, max(sub, (t // sub) * sub))


# ---------------------------------------------------------------------------
# Wrapper
# ---------------------------------------------------------------------------
@jax.jit
def smooth(x):
    """Equivalent of Smooth.forward for an NCHW tensor."""
    b, c, h, w = x.shape
    bc, hw = b * c, h * w

    # Free reshape of the contiguous NCHW array: lane axis = dense h*w image,
    # leading axis = b*c.  No padded copy is ever written to HBM.
    xf = x.reshape(bc, hw)

    bc_tile = _pick_bc_tile(bc, hw, x.dtype.itemsize)
    grid = (pl.cdiv(bc, bc_tile),)

    kernel = functools.partial(_smooth_kernel, h=h, w=w)

    out = pl.pallas_call(
        kernel,
        out_shape=jax.ShapeDtypeStruct((bc, hw), x.dtype),
        grid=grid,
        in_specs=[pl.BlockSpec((bc_tile, hw), lambda i: (i, 0))],
        out_specs=pl.BlockSpec((bc_tile, hw), lambda i: (i, 0)),
        compiler_params=pltpu.CompilerParams(
            dimension_semantics=("parallel",),
            vmem_limit_bytes=48 * 1024 * 1024,
        ),
    )(xf)
    return out.reshape(b, c, h, w)


# ---------------------------------------------------------------------------
# Pure-JAX reference (direct translation of ReplicationPad2d + conv2d spec)
# ---------------------------------------------------------------------------
def _smooth_ref(x):
    b, c, h, w = x.shape
    k = jnp.array([[1.0, 2.0, 1.0],
                   [2.0, 4.0, 2.0],
                   [1.0, 2.0, 1.0]], dtype=jnp.float32) / 16.0
    xp = jnp.pad(x.reshape(b * c, h, w).astype(jnp.float32),
                 ((0, 0), (1, 1), (1, 1)), mode="edge")
    out = jnp.zeros((b * c, h, w), dtype=jnp.float32)
    for di in range(3):
        for dj in range(3):
            out = out + k[di, dj] * xp[:, di:di + h, dj:dj + w]
    return out.reshape(b, c, h, w).astype(x.dtype)


# ---------------------------------------------------------------------------
# Unit test for the statically assumed roll convention (replaces the old
# runtime probe; zero cost in the production path).
# ---------------------------------------------------------------------------
def _check_roll_convention():
    def k(x_ref, o_ref):
        o_ref[...] = pltpu.roll(x_ref[...], 1, 1)

    xs = jax.lax.broadcasted_iota(jnp.float32, (8, 128), 1)
    ys = pl.pallas_call(
        k, out_shape=jax.ShapeDtypeStruct((8, 128), jnp.float32))(xs)
    ys = jax.device_get(ys)
    # numpy convention: roll(v, 1)[1] == v[0] == 0 and roll(v, 1)[0] == v[-1].
    assert ys[0, 1] == 0.0 and ys[0, 0] == 127.0, (
        "pltpu.roll does not follow the numpy convention; flip the shift "
        "constants in _smooth_kernel")


if __name__ == "__main__":
    _check_roll_convention()

    key = jax.random.PRNGKey(0)
    x = jax.random.normal(key, (2, 4, 16, 16), dtype=jnp.float32)

    y = smooth(x)
    jax.block_until_ready(y)

    y_ref = _smooth_ref(x)
    assert y.shape == x.shape and y.dtype == x.dtype
    err = float(jnp.max(jnp.abs(y - y_ref)))
    assert jnp.allclose(y, y_ref, atol=1e-5, rtol=1e-5), err

    print("KERNEL_OK")
</pallas_src>

<mosaic_0001>
module attributes {stable_mosaic.version = 11 : i64} {
  func.func @k(%arg0: memref<8x128xf32, #tpu.memory_space<vmem>>, %arg1: memref<8x128xf32, #tpu.memory_space<vmem>>) attributes {dimension_semantics = [], scalar_prefetch = 0 : i64, scratch_operands = 0 : i64, tpu.core_type = #tpu.core_type<tc>} {
    %c0 = arith.constant 0 : index
    %c0_0 = arith.constant 0 : index
    %0 = vector.load %arg0[%c0, %c0_0] : memref<8x128xf32, #tpu.memory_space<vmem>>, vector<8x128xf32>
    %c1_i32 = arith.constant 1 : i32
    %1 = tpu.dynamic_rotate %0 by %c1_i32 dim 1 : vector<8x128xf32>, i32 -> vector<8x128xf32>
    %c0_1 = arith.constant 0 : index
    %c0_2 = arith.constant 0 : index
    %2 = vector.load %arg1[%c0_1, %c0_2] : memref<8x128xf32, #tpu.memory_space<vmem>>, vector<8x128xf32>
    tpu.vector_store %arg1[%c0_1, %c0_2], %1 {strides = array<i32>} : memref<8x128xf32, #tpu.memory_space<vmem>>, vector<8x128xf32>,
    return
  }
}

</mosaic_0001>

<llo_original>
// kernel: tpu_custom_call.1
$region0: #{tpu_custom_call.1}
  #allocation0 [shape = 'u32[]', space=smem, size = 0x4, offset = 0x4, fixed_abs, tag = 'smem constant byte address 0x4 - core index']
  #allocation1 [shape = 'u32[144,128]{1,0:T(1,128)}', space=vmem, size = 0x12000, scoped, tag = 'internal scratch']
  %s0 = inlined_call_operand.hbm [shape: f32[8,128], index: 0, kind: input, shape index: {}]
  %s1 = inlined_call_operand.hbm [shape: f32[8,128], index: 1, kind: output, shape index: {}]
  %s2 = sld [smem:[#allocation0]]
  $region18: #{tpu_custom_call.1} parent=0
    _
  %s4 = ssub.s32 1, %s2
  %s5 = scalar_select 0, %s4, %s2
  $region1: #{tpu_custom_call.1} parent=0
    #allocation2 [shape = 'u8[4096]{0}', space=vmem, size = 0x1000, scoped, tag = 'input window, operand 0, single buffered']
    #allocation3 [shape = 's32[1]{0}', space=sflag, size = 0x4, scoped, tag = 'scoped memory for tpu_custom_call.1']
    #allocation4 [shape = 's32[1]{0}', space=sflag, size = 0x4, scoped, tag = 'scoped memory for tpu_custom_call.1']
    #allocation5 [shape = 'u8[4096]{0}', space=vmem, size = 0x1000, scoped, tag = 'output window, operand 0, single buffered']
    %6 = vsyncpa [#allocation3], 0
    %7 = vsyncpa [#allocation4], 0
    // Predicated region
    $region2: #{tpu_custom_call.1} parent=1 // pred_check
      _
    $region3: #{tpu_custom_call.1} parent=1 // pred_check_branch
      %9 = sbr.rel (0) target = $region5
    $region4: #{tpu_custom_call.1} parent=1 // pred_region
      %s11 = ssub.s32 128, 128
      %12 = vsyncadd [#allocation3], %s11
      %s14 = sshll.u32 [#allocation2], 4
      %s15 = int_to_ptr.vmem [resolvable:$true] %s14
      %17 = dma.hbm_to_vmem [thread:$0]  %s0, 128, %s15, [#allocation3]
    $region5: #{tpu_custom_call.1} parent=1 // pred_fallthru
      _
    // Predicated region
    $region6: #{tpu_custom_call.1} parent=1 // pred_check
      _
    $region7: #{tpu_custom_call.1} parent=1 // pred_check_branch
      %19 = sbr.rel (0) target = $region9
    $region8: #{tpu_custom_call.1} parent=1 // pred_region
      %20 = dma.done [#allocation3], 128
    $region9: #{tpu_custom_call.1} parent=1 // pred_fallthru
      _
    %v21 = vld [vmem:[#allocation2] sm:$0xff]
    %22 = vrot.lane.b32.xlu0 %v21, 1
    %v23 = vpop.permute.xlu0 %22
    %24 = vst [vmem:[#allocation5] sm:$0xff] %v23
    // Predicated region
    $region10: #{tpu_custom_call.1} parent=1 // pred_check
      _
    $region11: #{tpu_custom_call.1} parent=1 // pred_check_branch
      %26 = sbr.rel (0) target = $region13
    $region12: #{tpu_custom_call.1} parent=1 // pred_region
      %s28 = ssub.s32 128, 128
      %29 = vsyncadd [#allocation4], %s28
      %s31 = sshll.u32 [#allocation5], 4
      %s32 = int_to_ptr.vmem [resolvable:$true] %s31
      %34 = dma.vmem_to_hbm [thread:$0]  %s32, 128, %s1, [#allocation4]
    $region13: #{tpu_custom_call.1} parent=1 // pred_fallthru
      _
    // Predicated region
    $region14: #{tpu_custom_call.1} parent=1 // pred_check
      _
    $region15: #{tpu_custom_call.1} parent=1 // pred_check_branch
      %36 = sbr.rel (0) target = $region17
    $region16: #{tpu_custom_call.1} parent=1 // pred_region
      %37 = dma.done [#allocation4], 128
    $region17: #{tpu_custom_call.1} parent=1 // pred_fallthru
      _
    %38 = vsyncpa [#allocation3], 1
    %39 = vsyncpa [#allocation4], 1

</llo_original>
